<compile_context>
chip_gen: v5e
topology: v5e:2x2
jax: 0.10.0
libtpu: 0.0.40
codegen_flags: <defaults>
</compile_context>

<pallas_src>
import functools

import jax
import jax.numpy as jnp
from jax.experimental import pallas as pl
from jax.experimental.pallas import tpu as pltpu


KERNEL_SIZE = 15
CHANNELS = 4
LOG_SIGMA = 0.5  # module's log_sigma init value (nn.Parameter in torch)


def _round_up(n, m):
    return ((n + m - 1) // m) * m


# ---------------------------------------------------------------------------
# Weight construction (plain JAX glue, traced from log_sigma)
# ---------------------------------------------------------------------------
def _gaussian_1d(log_sigma, kernel_size):
    """Normalized 1-D Gaussian.  outer(g1, g1) == the module's normalized 2-D kernel."""
    variance = jnp.exp(2.0 * log_sigma)
    coords = jnp.arange(kernel_size, dtype=jnp.float32)
    mean = (kernel_size - 1) / 2.0
    g = jnp.exp(-((coords - mean) ** 2) / (2.0 * variance))
    return (g / jnp.sum(g)).astype(jnp.float32)


def _same_pad_toeplitz(n, g1, kernel_size):
    """Banded matrix T with T[a, b] = g1[a - b + pad] inside the band, else 0.

    (row @ T)[b] = sum_a row[a] * g1[a - b + pad]  ==  1-D cross-correlation
    with zero ("same") padding -- exactly torch.F.conv2d's per-axis behaviour.
    """
    pad = (kernel_size - 1) // 2
    idx = jnp.arange(n)
    d = idx[:, None] - idx[None, :] + pad
    valid = (d >= 0) & (d < kernel_size)
    return jnp.where(valid, g1[jnp.clip(d, 0, kernel_size - 1)], 0.0).astype(jnp.float32)


# ---------------------------------------------------------------------------
# Path A: small images -- single Kronecker matmul per block (lane-dense)
# ---------------------------------------------------------------------------
def _kron_blur_kernel(x_ref, k_ref, o_ref):
    """x_ref/o_ref: (rows, H*W).  k_ref: (H*W, H*W) = kron(T_H, T_W)."""
    o_ref[...] = jnp.dot(
        x_ref[...].astype(jnp.float32), k_ref[...],
        preferred_element_type=jnp.float32).astype(o_ref.dtype)


def _rows_per_block(bc, hw, itemsize, vmem_block_budget=4 << 20):
    """Rows per block: 8-aligned (or == bc), within a lane-padded VMEM budget,
    and leaving >= 2 grid steps for v7x megacore when the tensor is large."""
    row_bytes = _round_up(hw, 128) * itemsize          # (8,128)-padded lane width
    cap = max(1, vmem_block_budget // row_bytes)
    if bc <= cap and bc * row_bytes <= (1 << 20):
        return bc                                      # tiny problem: one step
    best = 0
    for d in range(8, min(cap, max(bc // 2, 1)) + 1, 8):
        if bc % d == 0:
            best = d                                   # >= 2 steps, 8-aligned
    if best:
        return best
    for d in range(8, bc, 8):                          # any aligned divisor
        if bc % d == 0:
            return d
    return bc                                          # full axis (always legal)


def _forward_kron(x, g1, kernel_size):
    B, C, H, W = x.shape
    bc, hw = B * C, H * W

    t_h = _same_pad_toeplitz(H, g1, kernel_size)       # (H, H)
    t_w = _same_pad_toeplitz(W, g1, kernel_size)       # (W, W)
    # per-plane: out = T_H^T @ X @ T_W   <=>   flat_out = flat_x @ kron(T_H, T_W)
    kmat = jnp.kron(t_h, t_w)                          # (H*W, H*W), f32

    rows = _rows_per_block(bc, hw, x.dtype.itemsize)
    grid = (bc // rows,)
    x2 = x.reshape(bc, hw)                             # free contiguous reshape

    flops = 2.0 * bc * hw * hw
    bytes_accessed = 2 * bc * hw * x.dtype.itemsize + hw * hw * 4

    out2 = pl.pallas_call(
        _kron_blur_kernel,
        out_shape=jax.ShapeDtypeStruct((bc, hw), x.dtype),
        grid_spec=pltpu.PrefetchScalarGridSpec(
            num_scalar_prefetch=0,
            grid=grid,
            in_specs=[
                pl.BlockSpec((rows, hw), lambda g: (g, 0)),
                pl.BlockSpec((hw, hw), lambda g: (0, 0)),
            ],
            out_specs=pl.BlockSpec((rows, hw), lambda g: (g, 0)),
        ),
        compiler_params=pltpu.CompilerParams(
            dimension_semantics=("parallel",),          # megacore sharding on v7x
            vmem_limit_bytes=32 * 1024 * 1024,          # safe on 64 MiB v7x parts
        ),
        cost_estimate=pl.CostEstimate(
            flops=int(flops), transcendentals=0,
            bytes_accessed=int(bytes_accessed)),
    )(x2, kmat)
    return out2.reshape(B, C, H, W)


# ---------------------------------------------------------------------------
# Path B: larger images -- separable two-pass kernel (validated previously)
# ---------------------------------------------------------------------------
def _separable_blur_kernel(x_ref, aw_ref, mh_ref, o_ref, *, planes, h):
    """x_ref/o_ref: (planes*h, W) blocks.  aw_ref: (W, W).  mh_ref: (h, h)."""
    aw = aw_ref[...]                      # row-blur Toeplitz (right multiply)
    mh = mh_ref[...]                      # column-blur Toeplitz (left multiply)

    # Row pass: one MXU matmul covering every row of every plane in the block.
    y = jnp.dot(x_ref[...].astype(jnp.float32), aw,
                preferred_element_type=jnp.float32)          # (planes*h, W)

    # Column pass: per-plane (h, h) @ (h, W) MXU matmuls (static unroll).
    for p in range(planes):
        yp = y[p * h:(p + 1) * h, :]
        o_ref[p * h:(p + 1) * h, :] = jnp.dot(
            mh, yp, preferred_element_type=jnp.float32).astype(o_ref.dtype)


def _planes_per_block(bc, h, w, itemsize, vmem_block_budget=8 << 20, max_unroll=32):
    """Largest divisor d of bc whose (d*H, W) block -- with (8, 128) VMEM
    padding -- fits the budget and keeps the sublane dim 8-aligned (or full)."""
    lane_w = _round_up(w, 128)

    def block_bytes(d):
        return _round_up(d * h, 8) * lane_w * itemsize

    legal = [d for d in range(1, bc + 1)
             if bc % d == 0 and ((d * h) % 8 == 0 or d == bc)]
    fitting = [d for d in legal
               if d <= max_unroll and block_bytes(d) <= vmem_block_budget]
    if fitting:
        return max(fitting)
    return min(legal)   # may exceed the budget but is always layout-legal


def _forward_separable(x, g1, kernel_size):
    B, C, H, W = x.shape
    bc = B * C

    aw = _same_pad_toeplitz(W, g1, kernel_size)        # right multiply: blur along W
    mh = _same_pad_toeplitz(H, g1, kernel_size).T      # left multiply:  blur along H

    planes = _planes_per_block(bc, H, W, x.dtype.itemsize)
    grid = (bc // planes,)
    x2 = x.reshape(bc * H, W)

    flops = 2.0 * bc * H * W * W + 2.0 * bc * H * H * W
    bytes_accessed = 2 * bc * H * W * x.dtype.itemsize + (H * H + W * W) * 4

    kernel = functools.partial(_separable_blur_kernel, planes=planes, h=H)
    out2 = pl.pallas_call(
        kernel,
        out_shape=jax.ShapeDtypeStruct((bc * H, W), x.dtype),
        grid_spec=pltpu.PrefetchScalarGridSpec(
            num_scalar_prefetch=0,
            grid=grid,
            in_specs=[
                pl.BlockSpec((planes * H, W), lambda g: (g, 0)),
                pl.BlockSpec((W, W), lambda g: (0, 0)),
                pl.BlockSpec((H, H), lambda g: (0, 0)),
            ],
            out_specs=pl.BlockSpec((planes * H, W), lambda g: (g, 0)),
        ),
        compiler_params=pltpu.CompilerParams(
            dimension_semantics=("parallel",),
            vmem_limit_bytes=32 * 1024 * 1024,
        ),
        cost_estimate=pl.CostEstimate(
            flops=int(flops), transcendentals=0,
            bytes_accessed=int(bytes_accessed)),
    )(x2, aw, mh)
    return out2.reshape(B, C, H, W)


# ---------------------------------------------------------------------------
# Wrapper
# ---------------------------------------------------------------------------
@functools.partial(jax.jit, static_argnames=("kernel_size",))
def gaussian_filter_forward(x, log_sigma, kernel_size=KERNEL_SIZE):
    B, C, H, W = x.shape
    g1 = _gaussian_1d(log_sigma, kernel_size)
    if H * W <= 1024:
        # Small image: one lane-dense Kronecker matmul (weight <= 4 MiB f32).
        return _forward_kron(x, g1, kernel_size)
    return _forward_separable(x, g1, kernel_size)


# ---------------------------------------------------------------------------
# Pure-JAX reference (torch F.conv2d(groups=C) semantics) for validation
# ---------------------------------------------------------------------------
def _reference_forward(x, log_sigma, kernel_size=KERNEL_SIZE):
    B, C, H, W = x.shape
    pad = (kernel_size - 1) // 2
    variance = jnp.exp(2.0 * log_sigma)
    coords = jnp.arange(kernel_size, dtype=jnp.float32)
    ii, jj = jnp.meshgrid(coords, coords, indexing="ij")
    mean = (kernel_size - 1) / 2.0
    gk = (1.0 / (2.0 * jnp.pi * variance)) * jnp.exp(
        -((ii - mean) ** 2 + (jj - mean) ** 2) / (2.0 * variance))
    gk = gk / jnp.sum(gk)
    w = jnp.broadcast_to(gk[None, None], (C, 1, kernel_size, kernel_size))
    return jax.lax.conv_general_dilated(
        x, w, window_strides=(1, 1), padding=((pad, pad), (pad, pad)),
        dimension_numbers=("NCHW", "OIHW", "NCHW"), feature_group_count=C)


if __name__ == "__main__":
    key = jax.random.PRNGKey(0)
    x = jax.random.normal(key, (2, CHANNELS, 16, 16), dtype=jnp.float32)
    log_sigma = jnp.float32(LOG_SIGMA)

    out = gaussian_filter_forward(x, log_sigma)
    out = jax.block_until_ready(out)

    ref = _reference_forward(x, log_sigma)
    assert out.shape == ref.shape == (2, CHANNELS, 16, 16)
    assert jnp.allclose(out, ref, atol=1e-4, rtol=1e-4), "mismatch vs reference conv"

    print("KERNEL_OK")
</pallas_src>

<mosaic_0001>
module attributes {stable_mosaic.version = 11 : i64} {
  func.func @_kron_blur_kernel(%arg0: i32, %arg1: memref<8x256xf32, #tpu.memory_space<vmem>>, %arg2: memref<256x256xf32, #tpu.memory_space<vmem>>, %arg3: memref<8x256xf32, #tpu.memory_space<vmem>>) attributes {dimension_semantics = [#tpu.dimension_semantics<parallel>], iteration_bounds = array<i64: 1>, scalar_prefetch = 0 : i64, scratch_operands = 0 : i64, tpu.core_type = #tpu.core_type<tc>, window_params = [{transform_indices = @transform_0, window_bounds = array<i64: 8, 256>}, {pipeline_mode = #tpu.pipeline_mode<synchronous>, transform_indices = @transform_1, window_bounds = array<i64: 256, 256>}, {transform_indices = @transform_2, window_bounds = array<i64: 8, 256>}]} {
    %c0 = arith.constant 0 : index
    %c0_0 = arith.constant 0 : index
    %0 = vector.load %arg1[%c0, %c0_0] : memref<8x256xf32, #tpu.memory_space<vmem>>, vector<8x256xf32>
    %c0_1 = arith.constant 0 : index
    %c0_2 = arith.constant 0 : index
    %1 = vector.load %arg2[%c0_1, %c0_2] : memref<256x256xf32, #tpu.memory_space<vmem>>, vector<256x256xf32>
    %cst = arith.constant dense<0.000000e+00> : vector<8x256xf32>
    %2 = tpu.matmul %0, %1, %cst {dimension_numbers = #tpu.dot_dimension_numbers<[1], [0], [0], [1], [0, 0, 1, 1], [], []>} : vector<8x256xf32>, vector<256x256xf32>, vector<8x256xf32> -> vector<8x256xf32>
    %c0_3 = arith.constant 0 : index
    %c0_4 = arith.constant 0 : index
    %3 = vector.load %arg3[%c0_3, %c0_4] : memref<8x256xf32, #tpu.memory_space<vmem>>, vector<8x256xf32>
    tpu.vector_store %arg3[%c0_3, %c0_4], %2 {strides = array<i32>} : memref<8x256xf32, #tpu.memory_space<vmem>>, vector<8x256xf32>,
    return
  }
  func.func @transform_0(%arg0: i32) -> (i32, i32) {
    %c0_i32 = arith.constant 0 : i32
    %c0_i32_0 = arith.constant 0 : i32
    return %arg0, %c0_i32 : i32, i32
  }
  func.func @transform_1(%arg0: i32) -> (i32, i32) {
    %c0_i32 = arith.constant 0 : i32
    %c0_i32_0 = arith.constant 0 : i32
    %c0_i32_1 = arith.constant 0 : i32
    return %c0_i32, %c0_i32_0 : i32, i32
  }
  func.func @transform_2(%arg0: i32) -> (i32, i32) {
    %c0_i32 = arith.constant 0 : i32
    %c0_i32_0 = arith.constant 0 : i32
    return %arg0, %c0_i32 : i32, i32
  }
}

</mosaic_0001>

<llo_original>
// kernel: gaussian_filter_forward.1
$region0: #{gaussian_filter_forward.1}
  #allocation0 [shape = 'u32[]', space=smem, size = 0x4, offset = 0x4, fixed_abs, tag = 'smem constant byte address 0x4 - core index']
  #allocation1 [shape = 'u32[72,128]{1,0:T(1,128)}', space=vmem, size = 0x9000, scoped, tag = 'internal scratch']
  %s0 = inlined_call_operand.vmem [shape: f32[8,256], index: 0, kind: input, shape index: {}]
  %s1 = inlined_call_operand.vmem [shape: f32[256,256], index: 1, kind: input, shape index: {}]
  %s2 = inlined_call_operand.vmem [shape: f32[8,256], index: 2, kind: output, shape index: {}]
  %s3 = sld [smem:[#allocation0]]
  $region18: #{gaussian_filter_forward.1} parent=0
    _
  %s5 = ssub.s32 1, %s3
  %s6 = scalar_select 0, %s5, %s3
  // Predicated region
  $region2: #{gaussian_filter_forward.1} parent=0 // pred_check
    _
  $region3: #{gaussian_filter_forward.1} parent=0 // pred_check_branch
    %8 = sbr.rel (0) target = $region5
  $region4: #{gaussian_filter_forward.1} parent=0 // pred_region
    _
  $region5: #{gaussian_filter_forward.1} parent=0 // pred_fallthru
    _
  // Predicated region
  $region6: #{gaussian_filter_forward.1} parent=0 // pred_check
    _
  $region7: #{gaussian_filter_forward.1} parent=0 // pred_check_branch
    %10 = sbr.rel (0) target = $region9
  $region8: #{gaussian_filter_forward.1} parent=0 // pred_region
    _
  $region9: #{gaussian_filter_forward.1} parent=0 // pred_fallthru
    _
  %v11 = vld [vmem:[%s0] sm:$0xff]
  %v12 = vld [vmem:[%s0 + $0x8] sm:$0xff]
  %v13 = vld [vmem:[%s1] sm:$0xff]
  %v14 = vld [vmem:[%s1 + $0x8] sm:$0xff]
  %v15 = vld [vmem:[%s1 + $0x10] sm:$0xff]
  %v16 = vld [vmem:[%s1 + $0x18] sm:$0xff]
  %v17 = vld [vmem:[%s1 + $0x20] sm:$0xff]
  %v18 = vld [vmem:[%s1 + $0x28] sm:$0xff]
  %v19 = vld [vmem:[%s1 + $0x30] sm:$0xff]
  %v20 = vld [vmem:[%s1 + $0x38] sm:$0xff]
  %v21 = vld [vmem:[%s1 + $0x40] sm:$0xff]
  %v22 = vld [vmem:[%s1 + $0x48] sm:$0xff]
  %v23 = vld [vmem:[%s1 + $0x50] sm:$0xff]
  %v24 = vld [vmem:[%s1 + $0x58] sm:$0xff]
  %v25 = vld [vmem:[%s1 + $0x60] sm:$0xff]
  %v26 = vld [vmem:[%s1 + $0x68] sm:$0xff]
  %v27 = vld [vmem:[%s1 + $0x70] sm:$0xff]
  %v28 = vld [vmem:[%s1 + $0x78] sm:$0xff]
  %v29 = vld [vmem:[%s1 + $0x80] sm:$0xff]
  %v30 = vld [vmem:[%s1 + $0x88] sm:$0xff]
  %v31 = vld [vmem:[%s1 + $0x90] sm:$0xff]
  %v32 = vld [vmem:[%s1 + $0x98] sm:$0xff]
  %v33 = vld [vmem:[%s1 + $0xa0] sm:$0xff]
  %v34 = vld [vmem:[%s1 + $0xa8] sm:$0xff]
  %v35 = vld [vmem:[%s1 + $0xb0] sm:$0xff]
  %v36 = vld [vmem:[%s1 + $0xb8] sm:$0xff]
  %v37 = vld [vmem:[%s1 + $0xc0] sm:$0xff]
  %v38 = vld [vmem:[%s1 + $0xc8] sm:$0xff]
  %v39 = vld [vmem:[%s1 + $0xd0] sm:$0xff]
  %v40 = vld [vmem:[%s1 + $0xd8] sm:$0xff]
  %v41 = vld [vmem:[%s1 + $0xe0] sm:$0xff]
  %v42 = vld [vmem:[%s1 + $0xe8] sm:$0xff]
  %v43 = vld [vmem:[%s1 + $0xf0] sm:$0xff]
  %v44 = vld [vmem:[%s1 + $0xf8] sm:$0xff]
  %v45 = vld [vmem:[%s1 + $0x100] sm:$0xff]
  %v46 = vld [vmem:[%s1 + $0x108] sm:$0xff]
  %v47 = vld [vmem:[%s1 + $0x110] sm:$0xff]
  %v48 = vld [vmem:[%s1 + $0x118] sm:$0xff]
  %v49 = vld [vmem:[%s1 + $0x120] sm:$0xff]
  %v50 = vld [vmem:[%s1 + $0x128] sm:$0xff]
  %v51 = vld [vmem:[%s1 + $0x130] sm:$0xff]
  %v52 = vld [vmem:[%s1 + $0x138] sm:$0xff]
  %v53 = vld [vmem:[%s1 + $0x140] sm:$0xff]
  %v54 = vld [vmem:[%s1 + $0x148] sm:$0xff]
  %v55 = vld [vmem:[%s1 + $0x150] sm:$0xff]
  %v56 = vld [vmem:[%s1 + $0x158] sm:$0xff]
  %v57 = vld [vmem:[%s1 + $0x160] sm:$0xff]
  %v58 = vld [vmem:[%s1 + $0x168] sm:$0xff]
  %v59 = vld [vmem:[%s1 + $0x170] sm:$0xff]
  %v60 = vld [vmem:[%s1 + $0x178] sm:$0xff]
  %v61 = vld [vmem:[%s1 + $0x180] sm:$0xff]
  %v62 = vld [vmem:[%s1 + $0x188] sm:$0xff]
  %v63 = vld [vmem:[%s1 + $0x190] sm:$0xff]
  %v64 = vld [vmem:[%s1 + $0x198] sm:$0xff]
  %v65 = vld [vmem:[%s1 + $0x1a0] sm:$0xff]
  %v66 = vld [vmem:[%s1 + $0x1a8] sm:$0xff]
  %v67 = vld [vmem:[%s1 + $0x1b0] sm:$0xff]
  %v68 = vld [vmem:[%s1 + $0x1b8] sm:$0xff]
  %v69 = vld [vmem:[%s1 + $0x1c0] sm:$0xff]
  %v70 = vld [vmem:[%s1 + $0x1c8] sm:$0xff]
  %v71 = vld [vmem:[%s1 + $0x1d0] sm:$0xff]
  %v72 = vld [vmem:[%s1 + $0x1d8] sm:$0xff]
  %v73 = vld [vmem:[%s1 + $0x1e0] sm:$0xff]
  %v74 = vld [vmem:[%s1 + $0x1e8] sm:$0xff]
  %v75 = vld [vmem:[%s1 + $0x1f0] sm:$0xff]
  %v76 = vld [vmem:[%s1 + $0x1f8] sm:$0xff]
  %77 = vmatpush.msra.mxu0 %v43
  %78 = vmatpush.msra.mxu0 %v41
  %79 = vmatpush.msra.mxu0 %v39
  %80 = vmatpush.msra.mxu0 %v37
  %81 = vmatpush.msra.mxu0 %v35
  %82 = vmatpush.msra.mxu0 %v33
  %83 = vmatpush.msra.mxu0 %v31
  %84 = vmatpush.msra.mxu0 %v29
  %85 = vmatpush.msra.mxu0 %v27
  %86 = vmatpush.msra.mxu0 %v25
  %87 = vmatpush.msra.mxu0 %v23
  %88 = vmatpush.msra.mxu0 %v21
  %89 = vmatpush.msra.mxu0 %v19
  %90 = vmatpush.msra.mxu0 %v17
  %91 = vmatpush.msra.mxu0 %v15
  %92 = vmatpush.msra.mxu0 %v13
  %93 = vmatmul.f32.gmra.mxu0 %v11
  %v94 = vpop.f32.mrf.mxu0
  %v95 = vadd.f32 0.0, %v94
  %96 = vdwg.mxu0
  %97 = vmatpush.msra.mxu0 %v75
  %98 = vmatpush.msra.mxu0 %v73
  %99 = vmatpush.msra.mxu0 %v71
  %100 = vmatpush.msra.mxu0 %v69
  %101 = vmatpush.msra.mxu0 %v67
  %102 = vmatpush.msra.mxu0 %v65
  %103 = vmatpush.msra.mxu0 %v63
  %104 = vmatpush.msra.mxu0 %v61
  %105 = vmatpush.msra.mxu0 %v59
  %106 = vmatpush.msra.mxu0 %v57
  %107 = vmatpush.msra.mxu0 %v55
  %108 = vmatpush.msra.mxu0 %v53
  %109 = vmatpush.msra.mxu0 %v51
  %110 = vmatpush.msra.mxu0 %v49
  %111 = vmatpush.msra.mxu0 %v47
  %112 = vmatpush.msra.mxu0 %v45
  %113 = vmatmul.f32.gmra.mxu0 %v12
  %v114 = vpop.f32.mrf.mxu0
  %v115 = vadd.f32 %v95, %v114
  %116 = vdwg.mxu0
  %117 = vmatpush.msra.mxu0 %v44
  %118 = vmatpush.msra.mxu0 %v42
  %119 = vmatpush.msra.mxu0 %v40
  %120 = vmatpush.msra.mxu0 %v38
  %121 = vmatpush.msra.mxu0 %v36
  %122 = vmatpush.msra.mxu0 %v34
  %123 = vmatpush.msra.mxu0 %v32
  %124 = vmatpush.msra.mxu0 %v30
  %125 = vmatpush.msra.mxu0 %v28
  %126 = vmatpush.msra.mxu0 %v26
  %127 = vmatpush.msra.mxu0 %v24
  %128 = vmatpush.msra.mxu0 %v22
  %129 = vmatpush.msra.mxu0 %v20
  %130 = vmatpush.msra.mxu0 %v18
  %131 = vmatpush.msra.mxu0 %v16
  %132 = vmatpush.msra.mxu0 %v14
  %133 = vmatmul.f32.gmra.mxu0 %v11
  %v134 = vpop.f32.mrf.mxu0
  %v135 = vadd.f32 0.0, %v134
  %136 = vdwg.mxu0
  %137 = vmatpush.msra.mxu0 %v76
  %138 = vmatpush.msra.mxu0 %v74
  %139 = vmatpush.msra.mxu0 %v72
  %140 = vmatpush.msra.mxu0 %v70
  %141 = vmatpush.msra.mxu0 %v68
  %142 = vmatpush.msra.mxu0 %v66
  %143 = vmatpush.msra.mxu0 %v64
  %144 = vmatpush.msra.mxu0 %v62
  %145 = vmatpush.msra.mxu0 %v60
  %146 = vmatpush.msra.mxu0 %v58
  %147 = vmatpush.msra.mxu0 %v56
  %148 = vmatpush.msra.mxu0 %v54
  %149 = vmatpush.msra.mxu0 %v52
  %150 = vmatpush.msra.mxu0 %v50
  %151 = vmatpush.msra.mxu0 %v48
  %152 = vmatpush.msra.mxu0 %v46
  %153 = vmatmul.f32.gmra.mxu0 %v12
  %v154 = vpop.f32.mrf.mxu0
  %v155 = vadd.f32 %v135, %v154
  %156 = vdwg.mxu0
  %157 = vst [vmem:[%s2] sm:$0xff] %v115
  %158 = vst [vmem:[%s2 + $0x8] sm:$0xff] %v155
  // Predicated region
  $region10: #{gaussian_filter_forward.1} parent=0 // pred_check
    _
  $region11: #{gaussian_filter_forward.1} parent=0 // pred_check_branch
    %160 = sbr.rel (0) target = $region13
  $region12: #{gaussian_filter_forward.1} parent=0 // pred_region
    _
  $region13: #{gaussian_filter_forward.1} parent=0 // pred_fallthru
    _
  // Predicated region
  $region14: #{gaussian_filter_forward.1} parent=0 // pred_check
    _
  $region15: #{gaussian_filter_forward.1} parent=0 // pred_check_branch
    %162 = sbr.rel (0) target = $region17
  $region16: #{gaussian_filter_forward.1} parent=0 // pred_region
    _
  $region17: #{gaussian_filter_forward.1} parent=0 // pred_fallthru
    _

</llo_original>
